<compile_context>
chip_gen: v6e
topology: v6e:2x2x1
jax: 0.10.0
libtpu: 0.0.40
codegen_flags: <defaults>
</compile_context>

<pallas_src>
import jax
import jax.numpy as jnp
import numpy as np
from jax.experimental import pallas as pl
from jax.experimental.pallas import tpu as pltpu


def _round_up(x, m):
    return (x + m - 1) // m * m


# ---------------------------------------------------------------------------
# Kernel: one row-tile of the full forward pass.
#   x     : [T, K_in]      f32  cat(pos, dist) zero-padded to K_in (sublane-aligned)
#   w1/b1 : [K_in, D1]     f32  blockdiag(pos_l1, dist_l1), D1 = rup(H/2+H/4, 128)
#   w2/b2 : [D1, D2]  bf16/f32  blockdiag(pos_l2, dist_l2), D2 = rup(H+H/2, 128)
#   wf/bf : [D2, Dout] bf16/f32 fusion weight, Dout = rup(H, 128)
# Three 128-lane-aligned MXU matmuls with f32 accumulation; bias/ReLU on the VPU.
# ---------------------------------------------------------------------------
def spatial_encoder_kernel(x_ref, w1_ref, b1_ref, w2_ref, b2_ref, wf_ref, bf_ref,
                           out_ref):
    x = x_ref[...]                                                    # [T, K_in] f32

    # Layer 1 of both encoders in one matmul (K is tiny, MXU is nearly idle anyway).
    h1 = jnp.maximum(
        jnp.dot(x, w1_ref[...], preferred_element_type=jnp.float32) + b1_ref[...],
        0.0)                                                          # [T, D1] f32

    # Layer 2 of both encoders -> cat(pos_feat, dist_feat) directly.
    feat = jnp.dot(h1.astype(jnp.bfloat16), w2_ref[...],
                   preferred_element_type=jnp.float32) + b2_ref[...]  # [T, D2] f32

    # Fusion + ReLU.
    fused = jnp.dot(feat.astype(jnp.bfloat16), wf_ref[...],
                    preferred_element_type=jnp.float32) + bf_ref[...] # [T, Dout] f32
    out_ref[...] = jnp.maximum(fused, 0.0).astype(out_ref.dtype)


def prepare_params(params):
    """One-time prep (load time, not per forward call): fold the two encoder
    branches into block-diagonal weights, pad every matmul dimension that feeds
    the MXU/output to a multiple of 128 (K_in to 8), and cast the two wide
    weights to bf16."""
    pos_dim, h_half = params["w1"].shape            # [pos_dim, H/2]
    hidden = params["w2"].shape[1]                  # H
    h_quarter = params["w3"].shape[1]               # H/4

    k_in = _round_up(pos_dim + 1, 8)
    d1 = _round_up(h_half + h_quarter, 128)         # layer-1 width   (96 -> 128)
    d2 = _round_up(hidden + h_half, 128)            # cat-feat width (192 -> 256)
    d_out = _round_up(hidden, 128)                  # output width

    w1c = jnp.zeros((k_in, d1), jnp.float32)
    w1c = w1c.at[:pos_dim, :h_half].set(params["w1"].astype(jnp.float32))
    w1c = w1c.at[pos_dim:pos_dim + 1, h_half:h_half + h_quarter].set(
        params["w3"].astype(jnp.float32))
    b1c = jnp.zeros((1, d1), jnp.float32)
    b1c = b1c.at[:, :h_half].set(params["b1"].astype(jnp.float32))
    b1c = b1c.at[:, h_half:h_half + h_quarter].set(params["b3"].astype(jnp.float32))

    w2c = jnp.zeros((d1, d2), jnp.float32)
    w2c = w2c.at[:h_half, :hidden].set(params["w2"].astype(jnp.float32))
    w2c = w2c.at[h_half:h_half + h_quarter, hidden:hidden + h_half].set(
        params["w4"].astype(jnp.float32))
    b2c = jnp.zeros((1, d2), jnp.float32)
    b2c = b2c.at[:, :hidden].set(params["b2"].astype(jnp.float32))
    b2c = b2c.at[:, hidden:hidden + h_half].set(params["b4"].astype(jnp.float32))

    wfc = jnp.zeros((d2, d_out), jnp.float32)
    wfc = wfc.at[:hidden + h_half, :hidden].set(params["wf"].astype(jnp.float32))
    bfc = jnp.zeros((1, d_out), jnp.float32)
    bfc = bfc.at[:, :hidden].set(params["bf"].astype(jnp.float32))

    return {
        "w1": w1c, "b1": b1c,
        "w2": w2c.astype(jnp.bfloat16), "b2": b2c,
        "wf": wfc.astype(jnp.bfloat16), "bf": bfc,
        "hidden": hidden, "pos_dim": pos_dim,
    }


def _default_tile_n(n):
    # Target >= ~8 grid steps (keeps both v7x TCs busy and the pipeline deep),
    # cap at 2048 rows (past the per-step-overhead knee, small VMEM footprint).
    return max(128, min(2048, _round_up((n + 7) // 8, 8)))


def spatial_encoder(pos, dist, prepared, *, tile_n=None, out_dtype=jnp.float32):
    """pos: [N, pos_dim] f32, dist: [N] f32 -> [N, hidden_dim] out_dtype."""
    N, pos_dim = pos.shape
    assert pos_dim == prepared["pos_dim"]
    hidden = prepared["hidden"]
    k_in = prepared["w1"].shape[0]
    d1 = prepared["w1"].shape[1]
    d2 = prepared["w2"].shape[1]
    d_out = prepared["wf"].shape[1]

    if tile_n is None:
        tile_n = _default_tile_n(N)
    tile_n = max(8, _round_up(tile_n, 8))

    # Single merged activation stream: [pos | dist | zero-pad] -> [N, k_in].
    x = jnp.concatenate(
        [pos.astype(jnp.float32),
         dist.reshape(N, 1).astype(jnp.float32),
         jnp.zeros((N, k_in - pos_dim - 1), jnp.float32)], axis=-1)

    # Pad rows to a tile multiple; padded rows compute on zeros and are sliced off.
    n_pad = _round_up(N, tile_n)
    if n_pad != N:
        x = jnp.pad(x, ((0, n_pad - N), (0, 0)))

    grid = (n_pad // tile_n,)

    weights = (prepared["w1"], prepared["b1"], prepared["w2"], prepared["b2"],
               prepared["wf"], prepared["bf"])

    def row_spec(feat):
        # Row-tiled activation stream: block index i along rows, full feature axis.
        return pl.BlockSpec((tile_n, feat), lambda i: (i, 0))

    def resident(arr):
        # Constant block index -> weight stays resident in VMEM across the grid.
        return pl.BlockSpec(arr.shape, lambda i: (0, 0))

    # Size the VMEM limit from what the tiles actually need (+ headroom); never
    # request the full 64 MiB of a v7x core.
    out_itemsize = jnp.dtype(out_dtype).itemsize
    bytes_io = 2 * tile_n * (k_in * 4 + d_out * out_itemsize)          # double-buffered in/out
    bytes_w = 2 * sum(int(np.prod(w.shape)) * w.dtype.itemsize for w in weights)
    bytes_tmp = tile_n * (k_in + d1 + d2 + d_out) * 4 + tile_n * (d1 + d2) * 2
    vmem_limit = int(min(32 << 20, max(16 << 20, bytes_io + bytes_w + bytes_tmp + (4 << 20))))

    out = pl.pallas_call(
        spatial_encoder_kernel,
        out_shape=jax.ShapeDtypeStruct((n_pad, d_out), out_dtype),
        grid=grid,
        in_specs=[row_spec(k_in)] + [resident(w) for w in weights],
        out_specs=row_spec(d_out),
        compiler_params=pltpu.CompilerParams(
            dimension_semantics=("parallel",),   # row tiles shard across TCs on v7x
            vmem_limit_bytes=vmem_limit,
        ),
    )(x, *weights)
    return out[:N, :hidden]


def init_params(key, pos_dim=2, hidden_dim=128):
    """Deterministic synthetic parameters, stored as [in, out] for each Linear."""
    ks = jax.random.split(key, 10)
    s = 0.1
    return {
        # pos_encoder: Linear(pos_dim, H//2) -> ReLU -> Linear(H//2, H)
        "w1": s * jax.random.normal(ks[0], (pos_dim, hidden_dim // 2), jnp.float32),
        "b1": s * jax.random.normal(ks[1], (1, hidden_dim // 2), jnp.float32),
        "w2": s * jax.random.normal(ks[2], (hidden_dim // 2, hidden_dim), jnp.float32),
        "b2": s * jax.random.normal(ks[3], (1, hidden_dim), jnp.float32),
        # dist_encoder: Linear(1, H//4) -> ReLU -> Linear(H//4, H//2)
        "w3": s * jax.random.normal(ks[4], (1, hidden_dim // 4), jnp.float32),
        "b3": s * jax.random.normal(ks[5], (1, hidden_dim // 4), jnp.float32),
        "w4": s * jax.random.normal(ks[6], (hidden_dim // 4, hidden_dim // 2), jnp.float32),
        "b4": s * jax.random.normal(ks[7], (1, hidden_dim // 2), jnp.float32),
        # fusion: Linear(H + H//2, H)
        "wf": s * jax.random.normal(ks[8], (hidden_dim + hidden_dim // 2, hidden_dim), jnp.float32),
        "bf": s * jax.random.normal(ks[9], (1, hidden_dim), jnp.float32),
    }


def spatial_encoder_ref(pos, dist, params):
    """Pure-JAX f32 reference mirroring the PyTorch forward exactly."""
    h = jnp.maximum(pos @ params["w1"] + params["b1"], 0.0)
    pos_feat = h @ params["w2"] + params["b2"]
    d = dist[..., None]
    h2 = jnp.maximum(d @ params["w3"] + params["b3"], 0.0)
    dist_feat = h2 @ params["w4"] + params["b4"]
    combined = jnp.concatenate([pos_feat, dist_feat], axis=-1)
    return jnp.maximum(combined @ params["wf"] + params["bf"], 0.0)


if __name__ == "__main__":
    key = jax.random.PRNGKey(0)
    k_pos, k_dist, k_param = jax.random.split(key, 3)

    N = 200          # not a tile multiple -> exercises the row-padding path
    POS_DIM = 2
    HIDDEN = 128     # module default; output slab is lane-dense (multiple of 128)

    pos = jax.random.normal(k_pos, (N, POS_DIM), jnp.float32)
    dist = jax.random.uniform(k_dist, (N,), jnp.float32)
    params = init_params(k_param, pos_dim=POS_DIM, hidden_dim=HIDDEN)
    prepared = prepare_params(params)

    # Auto tile (128 rows here -> 2 grid steps); production N would pick up to 2048.
    out = spatial_encoder(pos, dist, prepared)
    out = jax.block_until_ready(out)

    ref = spatial_encoder_ref(pos, dist, params)
    np.testing.assert_allclose(np.asarray(out), np.asarray(ref), rtol=2e-2, atol=2e-2)
    assert out.shape == (N, HIDDEN)

    print("KERNEL_OK")
</pallas_src>

<mosaic_0001>
module attributes {stable_mosaic.version = 11 : i64} {
  func.func @spatial_encoder_kernel(%arg0: i32, %arg1: memref<128x8xf32, #tpu.memory_space<vmem>>, %arg2: memref<8x128xf32, #tpu.memory_space<vmem>>, %arg3: memref<1x128xf32, #tpu.memory_space<vmem>>, %arg4: memref<128x256xbf16, #tpu.memory_space<vmem>>, %arg5: memref<1x256xf32, #tpu.memory_space<vmem>>, %arg6: memref<256x128xbf16, #tpu.memory_space<vmem>>, %arg7: memref<1x128xf32, #tpu.memory_space<vmem>>, %arg8: memref<128x128xf32, #tpu.memory_space<vmem>>) attributes {dimension_semantics = [#tpu.dimension_semantics<parallel>], iteration_bounds = array<i64: 2>, scalar_prefetch = 0 : i64, scratch_operands = 0 : i64, tpu.core_type = #tpu.core_type<tc>, window_params = [{transform_indices = @transform_0, window_bounds = array<i64: 128, 8>}, {pipeline_mode = #tpu.pipeline_mode<synchronous>, transform_indices = @transform_1, window_bounds = array<i64: 8, 128>}, {pipeline_mode = #tpu.pipeline_mode<synchronous>, transform_indices = @transform_2, window_bounds = array<i64: 1, 128>}, {pipeline_mode = #tpu.pipeline_mode<synchronous>, transform_indices = @transform_3, window_bounds = array<i64: 128, 256>}, {pipeline_mode = #tpu.pipeline_mode<synchronous>, transform_indices = @transform_4, window_bounds = array<i64: 1, 256>}, {pipeline_mode = #tpu.pipeline_mode<synchronous>, transform_indices = @transform_5, window_bounds = array<i64: 256, 128>}, {pipeline_mode = #tpu.pipeline_mode<synchronous>, transform_indices = @transform_6, window_bounds = array<i64: 1, 128>}, {transform_indices = @transform_7, window_bounds = array<i64: 128, 128>}]} {
    %c0 = arith.constant 0 : index
    %c0_0 = arith.constant 0 : index
    %0 = vector.load %arg1[%c0, %c0_0] : memref<128x8xf32, #tpu.memory_space<vmem>>, vector<128x8xf32>
    %c0_1 = arith.constant 0 : index
    %c0_2 = arith.constant 0 : index
    %1 = vector.load %arg2[%c0_1, %c0_2] : memref<8x128xf32, #tpu.memory_space<vmem>>, vector<8x128xf32>
    %cst = arith.constant dense<0.000000e+00> : vector<128x128xf32>
    %2 = tpu.matmul %0, %1, %cst {dimension_numbers = #tpu.dot_dimension_numbers<[1], [0], [0], [1], [0, 0, 1, 1], [], []>} : vector<128x8xf32>, vector<8x128xf32>, vector<128x128xf32> -> vector<128x128xf32>
    %c0_3 = arith.constant 0 : index
    %c0_4 = arith.constant 0 : index
    %3 = vector.load %arg3[%c0_3, %c0_4] : memref<1x128xf32, #tpu.memory_space<vmem>>, vector<1x128xf32>
    %4 = vector.broadcast %3 : vector<1x128xf32> to vector<128x128xf32>
    %5 = arith.addf %2, %4 : vector<128x128xf32>
    %cst_5 = arith.constant 0.000000e+00 : f32
    %6 = vector.broadcast %cst_5 : f32 to vector<128x128xf32>
    %7 = arith.maximumf %5, %6 : vector<128x128xf32>
    %8 = arith.truncf %7 : vector<128x128xf32> to vector<128x128xbf16>
    %c0_6 = arith.constant 0 : index
    %c0_7 = arith.constant 0 : index
    %9 = vector.load %arg4[%c0_6, %c0_7] : memref<128x256xbf16, #tpu.memory_space<vmem>>, vector<128x256xbf16>
    %cst_8 = arith.constant dense<0.000000e+00> : vector<128x256xf32>
    %10 = tpu.matmul %8, %9, %cst_8 {dimension_numbers = #tpu.dot_dimension_numbers<[1], [0], [0], [1], [0, 0, 1, 1], [], []>} : vector<128x128xbf16>, vector<128x256xbf16>, vector<128x256xf32> -> vector<128x256xf32>
    %c0_9 = arith.constant 0 : index
    %c0_10 = arith.constant 0 : index
    %11 = vector.load %arg5[%c0_9, %c0_10] : memref<1x256xf32, #tpu.memory_space<vmem>>, vector<1x256xf32>
    %12 = vector.broadcast %11 : vector<1x256xf32> to vector<128x256xf32>
    %13 = arith.addf %10, %12 : vector<128x256xf32>
    %14 = arith.truncf %13 : vector<128x256xf32> to vector<128x256xbf16>
    %c0_11 = arith.constant 0 : index
    %c0_12 = arith.constant 0 : index
    %15 = vector.load %arg6[%c0_11, %c0_12] : memref<256x128xbf16, #tpu.memory_space<vmem>>, vector<256x128xbf16>
    %cst_13 = arith.constant dense<0.000000e+00> : vector<128x128xf32>
    %16 = tpu.matmul %14, %15, %cst_13 {dimension_numbers = #tpu.dot_dimension_numbers<[1], [0], [0], [1], [0, 0, 1, 1], [], []>} : vector<128x256xbf16>, vector<256x128xbf16>, vector<128x128xf32> -> vector<128x128xf32>
    %c0_14 = arith.constant 0 : index
    %c0_15 = arith.constant 0 : index
    %17 = vector.load %arg7[%c0_14, %c0_15] : memref<1x128xf32, #tpu.memory_space<vmem>>, vector<1x128xf32>
    %18 = vector.broadcast %17 : vector<1x128xf32> to vector<128x128xf32>
    %19 = arith.addf %16, %18 : vector<128x128xf32>
    %cst_16 = arith.constant 0.000000e+00 : f32
    %20 = vector.broadcast %cst_16 : f32 to vector<128x128xf32>
    %21 = arith.maximumf %19, %20 : vector<128x128xf32>
    %c0_17 = arith.constant 0 : index
    %c0_18 = arith.constant 0 : index
    %22 = vector.load %arg8[%c0_17, %c0_18] : memref<128x128xf32, #tpu.memory_space<vmem>>, vector<128x128xf32>
    tpu.vector_store %arg8[%c0_17, %c0_18], %21 {strides = array<i32>} : memref<128x128xf32, #tpu.memory_space<vmem>>, vector<128x128xf32>,
    return
  }
  func.func @transform_0(%arg0: i32) -> (i32, i32) {
    %c0_i32 = arith.constant 0 : i32
    %c0_i32_0 = arith.constant 0 : i32
    return %arg0, %c0_i32 : i32, i32
  }
  func.func @transform_1(%arg0: i32) -> (i32, i32) {
    %c0_i32 = arith.constant 0 : i32
    %c0_i32_0 = arith.constant 0 : i32
    %c0_i32_1 = arith.constant 0 : i32
    return %c0_i32, %c0_i32_0 : i32, i32
  }
  func.func @transform_2(%arg0: i32) -> (i32, i32) {
    %c0_i32 = arith.constant 0 : i32
    %c0_i32_0 = arith.constant 0 : i32
    %c0_i32_1 = arith.constant 0 : i32
    return %c0_i32, %c0_i32_0 : i32, i32
  }
  func.func @transform_3(%arg0: i32) -> (i32, i32) {
    %c0_i32 = arith.constant 0 : i32
    %c0_i32_0 = arith.constant 0 : i32
    %c0_i32_1 = arith.constant 0 : i32
    return %c0_i32, %c0_i32_0 : i32, i32
  }
  func.func @transform_4(%arg0: i32) -> (i32, i32) {
    %c0_i32 = arith.constant 0 : i32
    %c0_i32_0 = arith.constant 0 : i32
    %c0_i32_1 = arith.constant 0 : i32
    return %c0_i32, %c0_i32_0 : i32, i32
  }
  func.func @transform_5(%arg0: i32) -> (i32, i32) {
    %c0_i32 = arith.constant 0 : i32
    %c0_i32_0 = arith.constant 0 : i32
    %c0_i32_1 = arith.constant 0 : i32
    return %c0_i32, %c0_i32_0 : i32, i32
  }
  func.func @transform_6(%arg0: i32) -> (i32, i32) {
    %c0_i32 = arith.constant 0 : i32
    %c0_i32_0 = arith.constant 0 : i32
    %c0_i32_1 = arith.constant 0 : i32
    return %c0_i32, %c0_i32_0 : i32, i32
  }
  func.func @transform_7(%arg0: i32) -> (i32, i32) {
    %c0_i32 = arith.constant 0 : i32
    %c0_i32_0 = arith.constant 0 : i32
    return %arg0, %c0_i32 : i32, i32
  }
}

</mosaic_0001>

<llo_original>
// kernel: tpu_custom_call.1
$region0: #{tpu_custom_call.1}
  #allocation0 [shape = 'u32[]', space=smem, size = 0x4, offset = 0x4, fixed_abs, tag = 'smem constant byte address 0x4 - core index']
  #allocation1 [shape = 'u32[144,128]{1,0:T(1,128)}', space=vmem, size = 0x12000, scoped, tag = 'internal scratch']
  %s0 = inlined_call_operand.vmem [shape: f32[256,8], index: 0, kind: input, shape index: {}]
  %s1 = inlined_call_operand.vmem [shape: f32[8,128], index: 1, kind: input, shape index: {}]
  %s2 = inlined_call_operand.vmem [shape: f32[1,128], index: 2, kind: input, shape index: {}]
  %s3 = inlined_call_operand.vmem [shape: bf16[128,256], index: 3, kind: input, shape index: {}]
  %s4 = inlined_call_operand.vmem [shape: f32[1,256], index: 4, kind: input, shape index: {}]
  %s5 = inlined_call_operand.vmem [shape: bf16[256,128], index: 5, kind: input, shape index: {}]
  %s6 = inlined_call_operand.vmem [shape: f32[1,128], index: 6, kind: input, shape index: {}]
  %s7 = inlined_call_operand.hbm [shape: f32[256,128], index: 7, kind: output, shape index: {}]
  %s8 = sld [smem:[#allocation0]]
  $region61: #{tpu_custom_call.1} parent=0
    _
  %s10 = ssub.s32 1, %s8
  %s11 = scalar_select 0, %s10, %s8
  $region1: #{tpu_custom_call.1} parent=0
    #allocation2 [shape = 'u8[131072]{0}', space=vmem, size = 0x20000, scoped, tag = 'output window, operand 0']
    #allocation3 [shape = 's32[2]{0}', space=sflag, size = 0x8, scoped, tag = 'scoped memory for tpu_custom_call.1']
    %12 = vsyncpa [#allocation3], 0
    %s13 = scalar_lea.sflag [#allocation3], 1
    %14 = vsyncpa %s13, 0
    loop: start=0, step=1, limit=4
    $region2: #{tpu_custom_call.1} parent=1 // loop_pre_header
      _
    $region3: #{tpu_custom_call.1} parent=1 // loop_header
      %s16 = sphi 0, %s20
      %p17 = scmp.ge.s32.totalorder %s16, 4
      %s26 = sphi 0, %s28
      %s29 = sphi 0, %s26
      %s30 = sphi 0, %s29
      %s46 = sphi 0, %s30
      %s50 = sphi 0, %s50
      %s52 = sphi 0, %s50
      %s53 = sphi 0, %s52
      %s67 = sphi 0, %s53
      %s71 = sphi 0, %s71
      %s73 = sphi 0, %s71
      %s74 = sphi 0, %s73
      %s88 = sphi 0, %s74
      %s92 = sphi 0, %s92
      %s94 = sphi 0, %s92
      %s95 = sphi 0, %s94
      %s109 = sphi 0, %s95
      %s113 = sphi 0, %s113
      %s115 = sphi 0, %s113
      %s116 = sphi 0, %s115
      %s130 = sphi 0, %s116
      %s134 = sphi 0, %s134
      %s136 = sphi 0, %s134
      %s137 = sphi 0, %s136
      %s151 = sphi 0, %s137
      %s155 = sphi 0, %s155
      %s157 = sphi 0, %s155
      %s158 = sphi 0, %s157
      %s172 = sphi 0, %s158
      %s178 = sphi 0, %s180
      %s181 = sphi 0, %s178
      %s182 = sphi 0, %s181
      %s198 = sphi 0, %s182
    $region4: #{tpu_custom_call.1} parent=1 // loop_header_branch
      %19 = sbr.rel (%p17) target = $region8
    $region5: #{tpu_custom_call.1} parent=1 // loop_body
      %s21 = ssub.s32 %s16, 1
      %s22 = ssub.s32 %s16, 2
      %s23 = sadd.s32 %s16, 1
      %s24 = ssub.s32 %s16, %s23
      %p25 = scmp.eq.s32.totalorder %s24, 0
      %s27 = sadd.s32 %s26, 1
      %s28 = scalar_select %p25, %s26, %s27
      %p31 = pneg %p25
      %p32 = scmp.eq.s32.totalorder %s16, 1
      %p33 = por %p31, %p32
      %p34 = scmp.ne.s32.totalorder %s26, %s29
      %p35 = scmp.eq.s32.totalorder %s16, 0
      %p36 = por %p34, %p35
      %p37 = scmp.ne.s32.totalorder %s26, %s29
      %p38 = scmp.eq.s32.totalorder %s21, 1
      %p39 = por %p37, %p38
      %p40 = scmp.ne.s32.totalorder %s29, %s30
      %p41 = scmp.eq.s32.totalorder %s21, 0
      %p42 = por %p40, %p41
      %p43 = scmp.ne.s32.totalorder %s29, %s30
      %p44 = scmp.eq.s32.totalorder %s22, 1
      %p45 = por %p43, %p44
      %p47 = scmp.ne.s32.totalorder %s30, %s46
      %p48 = scmp.eq.s32.totalorder %s22, 0
      %p49 = por %p47, %p48
      %s51 = sadd.s32 %s50, 1
      %p54 = scmp.eq.s32.totalorder %s16, 1
      %p55 = scmp.ne.s32.totalorder %s50, %s52
      %p56 = scmp.eq.s32.totalorder %s16, 0
      %p57 = por %p55, %p56
      %p58 = scmp.ne.s32.totalorder %s50, %s52
      %p59 = scmp.eq.s32.totalorder %s21, 1
      %p60 = por %p58, %p59
      %p61 = scmp.ne.s32.totalorder %s52, %s53
      %p62 = scmp.eq.s32.totalorder %s21, 0
      %p63 = por %p61, %p62
      %p64 = scmp.ne.s32.totalorder %s52, %s53
      %p65 = scmp.eq.s32.totalorder %s22, 1
      %p66 = por %p64, %p65
      %p68 = scmp.ne.s32.totalorder %s53, %s67
      %p69 = scmp.eq.s32.totalorder %s22, 0
      %p70 = por %p68, %p69
      %s72 = sadd.s32 %s71, 1
      %p75 = scmp.eq.s32.totalorder %s16, 1
      %p76 = scmp.ne.s32.totalorder %s71, %s73
      %p77 = scmp.eq.s32.totalorder %s16, 0
      %p78 = por %p76, %p77
      %p79 = scmp.ne.s32.totalorder %s71, %s73
      %p80 = scmp.eq.s32.totalorder %s21, 1
      %p81 = por %p79, %p80
      %p82 = scmp.ne.s32.totalorder %s73, %s74
      %p83 = scmp.eq.s32.totalorder %s21, 0
      %p84 = por %p82, %p83
      %p85 = scmp.ne.s32.totalorder %s73, %s74
      %p86 = scmp.eq.s32.totalorder %s22, 1
      %p87 = por %p85, %p86
      %p89 = scmp.ne.s32.totalorder %s74, %s88
      %p90 = scmp.eq.s32.totalorder %s22, 0
      %p91 = por %p89, %p90
      %s93 = sadd.s32 %s92, 1
      %p96 = scmp.eq.s32.totalorder %s16, 1
      %p97 = scmp.ne.s32.totalorder %s92, %s94
      %p98 = scmp.eq.s32.totalorder %s16, 0
      %p99 = por %p97, %p98
      %p100 = scmp.ne.s32.totalorder %s92, %s94
      %p101 = scmp.eq.s32.totalorder %s21, 1
      %p102 = por %p100, %p101
      %p103 = scmp.ne.s32.totalorder %s94, %s95
      %p104 = scmp.eq.s32.totalorder %s21, 0
      %p105 = por %p103, %p104
      %p106 = scmp.ne.s32.totalorder %s94, %s95
      %p107 = scmp.eq.s32.totalorder %s22, 1
      %p108 = por %p106, %p107
      %p110 = scmp.ne.s32.totalorder %s95, %s109
      %p111 = scmp.eq.s32.totalorder %s22, 0
      %p112 = por %p110, %p111
      %s114 = sadd.s32 %s113, 1
      %p117 = scmp.eq.s32.totalorder %s16, 1
      %p118 = scmp.ne.s32.totalorder %s113, %s115
      %p119 = scmp.eq.s32.totalorder %s16, 0
      %p120 = por %p118, %p119
      %p121 = scmp.ne.s32.totalorder %s113, %s115
      %p122 = scmp.eq.s32.totalorder %s21, 1
      %p123 = por %p121, %p122
      %p124 = scmp.ne.s32.totalorder %s115, %s116
      %p125 = scmp.eq.s32.totalorder %s21, 0
      %p126 = por %p124, %p125
      %p127 = scmp.ne.s32.totalorder %s115, %s116
      %p128 = scmp.eq.s32.totalorder %s22, 1
      %p129 = por %p127, %p128
      %p131 = scmp.ne.s32.totalorder %s116, %s130
      %p132 = scmp.eq.s32.totalorder %s22, 0
      %p133 = por %p131, %p132
      %s135 = sadd.s32 %s134, 1
      %p138 = scmp.eq.s32.totalorder %s16, 1
      %p139 = scmp.ne.s32.totalorder %s134, %s136
      %p140 = scmp.eq.s32.totalorder %s16, 0
      %p141 = por %p139, %p140
      %p142 = scmp.ne.s32.totalorder %s134, %s136
      %p143 = scmp.eq.s32.totalorder %s21, 1
      %p144 = por %p142, %p143
      %p145 = scmp.ne.s32.totalorder %s136, %s137
      %p146 = scmp.eq.s32.totalorder %s21, 0
      %p147 = por %p145, %p146
      %p148 = scmp.ne.s32.totalorder %s136, %s137
      %p149 = scmp.eq.s32.totalorder %s22, 1
      %p150 = por %p148, %p149
      %p152 = scmp.ne.s32.totalorder %s137, %s151
      %p153 = scmp.eq.s32.totalorder %s22, 0
      %p154 = por %p152, %p153
      %s156 = sadd.s32 %s155, 1
      %p159 = scmp.eq.s32.totalorder %s16, 1
      %p160 = scmp.ne.s32.totalorder %s155, %s157
      %p161 = scmp.eq.s32.totalorder %s16, 0
      %p162 = por %p160, %p161
      %p163 = scmp.ne.s32.totalorder %s155, %s157
      %p164 = scmp.eq.s32.totalorder %s21, 1
      %p165 = por %p163, %p164
      %p166 = scmp.ne.s32.totalorder %s157, %s158
      %p167 = scmp.eq.s32.totalorder %s21, 0
      %p168 = por %p166, %p167
      %p169 = scmp.ne.s32.totalorder %s157, %s158
      %p170 = scmp.eq.s32.totalorder %s22, 1
      %p171 = por %p169, %p170
      %p173 = scmp.ne.s32.totalorder %s158, %s172
      %p174 = scmp.eq.s32.totalorder %s22, 0
      %p175 = por %p173, %p174
      %s176 = ssub.s32 %s16, %s23
      %p177 = scmp.eq.s32.totalorder %s176, 0
      %s179 = sadd.s32 %s178, 1
      %s180 = scalar_select %p177, %s178, %s179
      %p183 = pneg %p177
      %p184 = scmp.eq.s32.totalorder %s16, 1
      %p185 = por %p183, %p184
      %p186 = scmp.ne.s32.totalorder %s178, %s181
      %p187 = scmp.eq.s32.totalorder %s16, 0
      %p188 = por %p186, %p187
      %p189 = scmp.ne.s32.totalorder %s178, %s181
      %p190 = scmp.eq.s32.totalorder %s21, 1
      %p191 = por %p189, %p190
      %p192 = scmp.ne.s32.totalorder %s181, %s182
      %p193 = scmp.eq.s32.totalorder %s21, 0
      %p194 = por %p192, %p193
      %p195 = scmp.ne.s32.totalorder %s181, %s182
      %p196 = scmp.eq.s32.totalorder %s22, 1
      %p197 = por %p195, %p196
      %p199 = scmp.ne.s32.totalorder %s182, %s198
      %p200 = scmp.eq.s32.totalorder %s22, 0
      %p201 = por %p199, %p200
      %p202 = scmp.le.s32.totalorder 1, %s16
      %p203 = scmp.lt.s32.totalorder %s16, 3
      %p204 = pnand %p202, %p203
      %p205 = pneg %p204
      // Predicated region
      $region9: #{tpu_custom_call.1} parent=5 // pred_check
        _
      $region10: #{tpu_custom_call.1} parent=5 // pred_check_branch
        %207 = sbr.rel (%p204) target = $region12
      $region11: #{tpu_custom_call.1} parent=5 // pred_region
        %s208 = ssub.s32 %s16, 1
        // Predicated region
        $region13: #{tpu_custom_call.1} parent=11 // pred_check
          %p209 = pneg %p63
        $region14: #{tpu_custom_call.1} parent=11 // pred_check_branch
          %211 = sbr.rel (%p209) target = $region16
        $region15: #{tpu_custom_call.1} parent=11 // pred_region
          _
        $region16: #{tpu_custom_call.1} parent=11 // pred_fallthru
          _
        // Predicated region
        $region17: #{tpu_custom_call.1} parent=11 // pred_check
          %p212 = pneg %p84
        $region18: #{tpu_custom_call.1} parent=11 // pred_check_branch
          %214 = sbr.rel (%p212) target = $region20
        $region19: #{tpu_custom_call.1} parent=11 // pred_region
          _
        $region20: #{tpu_custom_call.1} parent=11 // pred_fallthru
          _
        // Predicated region
        $region21: #{tpu_custom_call.1} parent=11 // pred_check
          %p215 = pneg %p105
        $region22: #{tpu_custom_call.1} parent=11 // pred_check_branch
          %217 = sbr.rel (%p215) target = $region24
        $region23: #{tpu_custom_call.1} parent=11 // pred_region
          _
        $region24: #{tpu_custom_call.1} parent=11 // pred_fallthru
          _
        // Predicated region
        $region25: #{tpu_custom_call.1} parent=11 // pred_check
          %p218 = pneg %p126
        $region26: #{tpu_custom_call.1} parent=11 // pred_check_branch
          %220 = sbr.rel (%p218) target = $region28
        $region27: #{tpu_custom_call.1} parent=11 // pred_region
          _
        $region28: #{tpu_custom_call.1} parent=11 // pred_fallthru
          _
        // Predicated region
        $region29: #{tpu_custom_call.1} parent=11 // pred_check
          %p221 = pneg %p147
        $region30: #{tpu_custom_call.1} parent=11 // pred_check_branch
          %223 = sbr.rel (%p221) target = $region32
        $region31: #{tpu_custom_call.1} parent=11 // pred_region
          _
        $region32: #{tpu_custom_call.1} parent=11 // pred_fallthru
          _
        // Predicated region
        $region33: #{tpu_custom_call.1} parent=11 // pred_check
          %p224 = pneg %p168
        $region34: #{tpu_custom_call.1} parent=11 // pred_check_branch
          %226 = sbr.rel (%p224) target = $region36
        $region35: #{tpu_custom_call.1} parent=11 // pred_region
          _
        $region36: #{tpu_custom_call.1} parent=11 // pred_fallthru
          _
      $region12: #{tpu_custom_call.1} parent=5 // pred_fallthru
        _
      %p227 = scmp.lt.s32.totalorder %s16, 2
      // Predicated region
      $region37: #{tpu_custom_call.1} parent=5 // pred_check
        %p228 = pneg %p227
      $region38: #{tpu_custom_call.1} parent=5 // pred_check_branch
        %230 = sbr.rel (%p228) target = $region40
      $region39: #{tpu_custom_call.1} parent=5 // pred_region
        // Predicated region
        $region41: #{tpu_custom_call.1} parent=39 // pred_check
          %p231 = pneg %p36
        $region42: #{tpu_custom_call.1} parent=39 // pred_check_branch
          %233 = sbr.rel (%p231) target = $region44
        $region43: #{tpu_custom_call.1} parent=39 // pred_region
          %s234 = smul.u32 16, %s16
          %p235 = scmp.lt.s32.totalorder %s234, 31
          %s236 = scalar_select %p235, %s234, 31
          %s237 = smul.addr %s236, 8
          %s238 = scalar_lea.vmem %s0, %s237
          %s239 = smul.u32 16, %s16
        $region44: #{tpu_custom_call.1} parent=39 // pred_fallthru
          _
      $region40: #{tpu_custom_call.1} parent=5 // pred_fallthru
        _
      %p240 = scmp.le.s32.totalorder 1, %s16
      %p241 = scmp.lt.s32.totalorder %s16, 3
      %p242 = pnand %p240, %p241
      %p243 = pneg %p242
      // Predicated region
      $region45: #{tpu_custom_call.1} parent=5 // pred_check
        _
      $region46: #{tpu_custom_call.1} parent=5 // pred_check_branch
        %245 = sbr.rel (%p242) target = $region48
      $region47: #{tpu_custom_call.1} parent=5 // pred_region
        %s246 = ssub.s32 %s16, 1
        %s247 = smul.u32 16, %s21
        %p248 = scmp.lt.s32.totalorder %s247, 31
        %s249 = scalar_select %p248, %s247, 31
        %s250 = smul.addr %s249, 8
        %s251 = scalar_lea.vmem %s0, %s250
        %p252 = pneg %p42
        %p253 = pneg %p39
        %p254 = pneg %p63
        %p255 = pneg %p60
        %p256 = pneg %p84
        %p257 = pneg %p81
        %p258 = pneg %p105
        %p259 = pneg %p102
        %p260 = pneg %p126
        %p261 = pneg %p123
        %p262 = pneg %p147
        %p263 = pneg %p144
        %p264 = pneg %p168
        %p265 = pneg %p165
        %p266 = pneg %p194
        %p267 = pneg %p191
        %s268 = sand.u32 %s181, 1
        %s269 = scalar_lea.sflag [#allocation3], %s268
        %s270 = sand.u32 %s181, 1
        %s271 = smul.addr %s270, 128
        %s272 = scalar_lea.vmem [#allocation2], %s271
        %s273 = smul.u32 16, %s21
        %p274 = scmp.lt.s32.totalorder %s273, 31
        %s275 = scalar_select %p274, %s273, 31
        %s276 = smul.addr %s275, 8
        %s277 = scalar_lea.vmem %s0, %s276
        %s278 = smul.u32 16, %s21
        %s279 = smul.u32 16, %s21
        %v281 = vld [vmem:[%s277] sm:$0xff]
        %v282 = vld [vmem:[%s277 + $0x8] sm:$0xff]
        %v283 = vld [vmem:[%s277 + $0x10] sm:$0xff]
        %v284 = vld [vmem:[%s277 + $0x18] sm:$0xff]
        %v285 = vld [vmem:[%s277 + $0x20] sm:$0xff]
        %v286 = vld [vmem:[%s277 + $0x28] sm:$0xff]
        %v287 = vld [vmem:[%s277 + $0x30] sm:$0xff]
        %v288 = vld [vmem:[%s277 + $0x38] sm:$0xff]
        %v289 = vld [vmem:[%s277 + $0x40] sm:$0xff]
        %v290 = vld [vmem:[%s277 + $0x48] sm:$0xff]
        %v291 = vld [vmem:[%s277 + $0x50] sm:$0xff]
        %v292 = vld [vmem:[%s277 + $0x58] sm:$0xff]
        %v293 = vld [vmem:[%s277 + $0x60] sm:$0xff]
        %v294 = vld [vmem:[%s277 + $0x68] sm:$0xff]
        %v295 = vld [vmem:[%s277 + $0x70] sm:$0xff]
        %v296 = vld [vmem:[%s277 + $0x78] sm:$0xff]
        %v297 = vld [vmem:[%s1] sm:$0xff]
        %v298 = vld [vmem:[%s2] sm:$0x1]
        %v300 = vlaneseq
        %v301 = vshrl.u32 %v300, 7
        %v302 = vsub.s32 0, %v301
        %v303 = vrot.slane %v298, %v302
        %vm305 = vcmask 64512
        %v307 = vsel %vm305, %v281, 0
        %v310 = vsel %vm305, %v282, 0
        %v313 = vsel %vm305, %v283, 0
        %v316 = vsel %vm305, %v284, 0
        %v319 = vsel %vm305, %v285, 0
        %v322 = vsel %vm305, %v286, 0
        %v325 = vsel %vm305, %v287, 0
        %v328 = vsel %vm305, %v288, 0
        %v331 = vsel %vm305, %v289, 0
        %v334 = vsel %vm305, %v290, 0
        %v337 = vsel %vm305, %v291, 0
        %v340 = vsel %vm305, %v292, 0
        %v343 = vsel %vm305, %v293, 0
        %v346 = vsel %vm305, %v294, 0
        %v349 = vsel %vm305, %v295, 0
        %v352 = vsel %vm305, %v296, 0
        %354 = vmatprep.subr.mxu0 0.0
        %355 = vmatpush1.msra.mxu0 0.0
        %356 = vmatprep.subr.mxu0 0.0
        %357 = vmatpush1.msra.mxu0 0.0
        %358 = vmatprep.subr.mxu0 0.0
        %359 = vmatpush1.msra.mxu0 0.0
        %360 = vmatprep.subr.mxu0 0.0
        %361 = vmatpush1.msra.mxu0 0.0
        %362 = vmatprep.subr.mxu0 0.0
        %363 = vmatpush1.msra.mxu0 0.0
        %364 = vmatprep.subr.mxu0 0.0
        %365 = vmatpush1.msra.mxu0 0.0
        %366 = vmatprep.subr.mxu0 0.0
        %367 = vmatpush1.msra.mxu0 0.0
        %368 = vmatprep.subr.mxu0 0.0
        %369 = vmatpush1.msra.mxu0 0.0
        %370 = vmatprep.subr.mxu0 0.0
        %371 = vmatpush1.msra.mxu0 0.0
        %372 = vmatprep.subr.mxu0 0.0
        %373 = vmatpush1.msra.mxu0 0.0
        %374 = vmatprep.subr.mxu0 0.0
        %375 = vmatpush1.msra.mxu0 0.0
        %376 = vmatprep.subr.mxu0 0.0
        %377 = vmatpush1.msra.mxu0 0.0
        %378 = vmatprep.subr.mxu0 0.0
        %379 = vmatpush1.msra.mxu0 0.0
        %380 = vmatprep.subr.mxu0 0.0
        %381 = vmatpush1.msra.mxu0 0.0
        %382 = vmatprep.subr.mxu0 0.0
        %383 = vmatpush1.msra.mxu0 0.0
        %384 = vmatprep.subr.mxu0 0.0
        %385 = vmatpush1.msra.mxu0 %v297
        %386 = vmatprep.subr.mxu0 0.0
        %387 = vmatpush2.msra.mxu0 0.0
        %388 = vmatprep.subr.mxu0 0.0
        %389 = vmatpush2.msra.mxu0 0.0
        %390 = vmatprep.subr.mxu0 0.0
        %391 = vmatpush2.msra.mxu0 0.0
        %392 = vmatprep.subr.mxu0 0.0
        %393 = vmatpush2.msra.mxu0 0.0
        %394 = vmatprep.subr.mxu0 0.0
        %395 = vmatpush2.msra.mxu0 0.0
        %396 = vmatprep.subr.mxu0 0.0
        %397 = vmatpush2.msra.mxu0 0.0
        %398 = vmatprep.subr.mxu0 0.0
        %399 = vmatpush2.msra.mxu0 0.0
        %400 = vmatprep.subr.mxu0 0.0
        %401 = vmatpush2.msra.mxu0 0.0
        %402 = vmatprep.subr.mxu0 0.0
        %403 = vmatpush2.msra.mxu0 0.0
        %404 = vmatprep.subr.mxu0 0.0
        %405 = vmatpush2.msra.mxu0 0.0
        %406 = vmatprep.subr.mxu0 0.0
        %407 = vmatpush2.msra.mxu0 0.0
        %408 = vmatprep.subr.mxu0 0.0
        %409 = vmatpush2.msra.mxu0 0.0
        %410 = vmatprep.subr.mxu0 0.0
        %411 = vmatpush2.msra.mxu0 0.0
        %412 = vmatprep.subr.mxu0 0.0
        %413 = vmatpush2.msra.mxu0 0.0
        %414 = vmatprep.subr.mxu0 0.0
        %415 = vmatpush2.msra.mxu0 0.0
        %416 = vmatprep.subr.mxu0 0.0
        %417 = vmatpush2.msra.mxu0 0.0
        %418 = vmatprep.mubr.f32.mxu0 0.0
        %419 = vmatmul.mubr.f32.gmra.mxu0 %v307
        %v420 = vpop.f32.mrf.mxu0
        %v421 = vadd.f32 %v303, %v420
        %v422 = vpop.f32.mrf.mxu0
        %423 = vmatprep.mubr.f32.mxu0 0.0
        %424 = vmatmul.mubr.f32.gmra.mxu0 %v310
        %v425 = vpop.f32.mrf.mxu0
        %v426 = vadd.f32 %v303, %v425
        %v427 = vpop.f32.mrf.mxu0
        %428 = vmatprep.mubr.f32.mxu0 0.0
        %429 = vmatmul.mubr.f32.gmra.mxu0 %v313
        %v430 = vpop.f32.mrf.mxu0
        %v431 = vadd.f32 %v303, %v430
        %v432 = vpop.f32.mrf.mxu0
        %433 = vmatprep.mubr.f32.mxu0 0.0
        %434 = vmatmul.mubr.f32.gmra.mxu0 %v316
        %v435 = vpop.f32.mrf.mxu0
        %v436 = vadd.f32 %v303, %v435
        %v437 = vpop.f32.mrf.mxu0
        %438 = vmatprep.mubr.f32.mxu0 0.0
        %439 = vmatmul.mubr.f32.gmra.mxu0 %v319
        %v440 = vpop.f32.mrf.mxu0
        %v441 = vadd.f32 %v303, %v440
        %v442 = vpop.f32.mrf.mxu0
        %443 = vmatprep.mubr.f32.mxu0 0.0
        %444 = vmatmul.mubr.f32.gmra.mxu0 %v322
        %v445 = vpop.f32.mrf.mxu0
        %v446 = vadd.f32 %v303, %v445
        %v447 = vpop.f32.mrf.mxu0
        %448 = vmatprep.mubr.f32.mxu0 0.0
        %449 = vmatmul.mubr.f32.gmra.mxu0 %v325
        %v450 = vpop.f32.mrf.mxu0
        %v451 = vadd.f32 %v303, %v450
        %v452 = vpop.f32.mrf.mxu0
        %453 = vmatprep.mubr.f32.mxu0 0.0
        %454 = vmatmul.mubr.f32.gmra.mxu0 %v328
        %v455 = vpop.f32.mrf.mxu0
        %v456 = vadd.f32 %v303, %v455
        %v457 = vpop.f32.mrf.mxu0
        %458 = vmatprep.mubr.f32.mxu0 0.0
        %459 = vmatmul.mubr.f32.gmra.mxu0 %v331
        %v460 = vpop.f32.mrf.mxu0
        %v461 = vadd.f32 %v303, %v460
        %v462 = vpop.f32.mrf.mxu0
        %463 = vmatprep.mubr.f32.mxu0 0.0
        %464 = vmatmul.mubr.f32.gmra.mxu0 %v334
        %v465 = vpop.f32.mrf.mxu0
        %v466 = vadd.f32 %v303, %v465
        %v467 = vpop.f32.mrf.mxu0
        %468 = vmatprep.mubr.f32.mxu0 0.0
        %469 = vmatmul.mubr.f32.gmra.mxu0 %v337
        %v470 = vpop.f32.mrf.mxu0
        %v471 = vadd.f32 %v303, %v470
        %v472 = vpop.f32.mrf.mxu0
        %473 = vmatprep.mubr.f32.mxu0 0.0
        %474 = vmatmul.mubr.f32.gmra.mxu0 %v340
        %v475 = vpop.f32.mrf.mxu0
        %v476 = vadd.f32 %v303, %v475
        %v477 = vpop.f32.mrf.mxu0
        %478 = vmatprep.mubr.f32.mxu0 0.0
        %479 = vmatmul.mubr.f32.gmra.mxu0 %v343
        %v480 = vpop.f32.mrf.mxu0
        %v481 = vadd.f32 %v303, %v480
        %v482 = vpop.f32.mrf.mxu0
        %483 = vmatprep.mubr.f32.mxu0 0.0
        %484 = vmatmul.mubr.f32.gmra.mxu0 %v346
        %v485 = vpop.f32.mrf.mxu0
        %v486 = vadd.f32 %v303, %v485
        %v487 = vpop.f32.mrf.mxu0
        %488 = vmatprep.mubr.f32.mxu0 0.0
        %489 = vmatmul.mubr.f32.gmra.mxu0 %v349
        %v490 = vpop.f32.mrf.mxu0
        %v491 = vadd.f32 %v303, %v490
        %v492 = vpop.f32.mrf.mxu0
        %493 = vmatprep.mubr.f32.mxu0 0.0
        %494 = vmatmul.mubr.f32.gmra.mxu0 %v352
        %v495 = vpop.f32.mrf.mxu0
        %v496 = vadd.f32 %v303, %v495
        %v497 = vpop.f32.mrf.mxu0
        %498 = vdwg.mxu0
        %v499 = vmax.f32 %v421, 0.0
        %v500 = vmax.f32 %v426, 0.0
        %v501 = vmax.f32 %v431, 0.0
        %v502 = vmax.f32 %v436, 0.0
        %v503 = vmax.f32 %v441, 0.0
        %v504 = vmax.f32 %v446, 0.0
        %v505 = vmax.f32 %v451, 0.0
        %v506 = vmax.f32 %v456, 0.0
        %v507 = vmax.f32 %v461, 0.0
        %v508 = vmax.f32 %v466, 0.0
        %v509 = vmax.f32 %v471, 0.0
        %v510 = vmax.f32 %v476, 0.0
        %v511 = vmax.f32 %v481, 0.0
        %v512 = vmax.f32 %v486, 0.0
        %v513 = vmax.f32 %v491, 0.0
        %v514 = vmax.f32 %v496, 0.0
        %v515 = vpack.c.bf16 %v500, %v499
        %v516 = vpack.c.bf16 %v502, %v501
        %v517 = vpack.c.bf16 %v504, %v503
        %v518 = vpack.c.bf16 %v506, %v505
        %v519 = vpack.c.bf16 %v508, %v507
        %v520 = vpack.c.bf16 %v510, %v509
        %v521 = vpack.c.bf16 %v512, %v511
        %v522 = vpack.c.bf16 %v514, %v513
        %v523 = vld [vmem:[%s3] sm:$0xff]
        %v524 = vld [vmem:[%s3 + $0x8] sm:$0xff]
        %v525 = vld [vmem:[%s3 + $0x10] sm:$0xff]
        %v526 = vld [vmem:[%s3 + $0x18] sm:$0xff]
        %v527 = vld [vmem:[%s3 + $0x20] sm:$0xff]
        %v528 = vld [vmem:[%s3 + $0x28] sm:$0xff]
        %v529 = vld [vmem:[%s3 + $0x30] sm:$0xff]
        %v530 = vld [vmem:[%s3 + $0x38] sm:$0xff]
        %v531 = vld [vmem:[%s3 + $0x40] sm:$0xff]
        %v532 = vld [vmem:[%s3 + $0x48] sm:$0xff]
        %v533 = vld [vmem:[%s3 + $0x50] sm:$0xff]
        %v534 = vld [vmem:[%s3 + $0x58] sm:$0xff]
        %v535 = vld [vmem:[%s3 + $0x60] sm:$0xff]
        %v536 = vld [vmem:[%s3 + $0x68] sm:$0xff]
        %v537 = vld [vmem:[%s3 + $0x70] sm:$0xff]
        %v538 = vld [vmem:[%s3 + $0x78] sm:$0xff]
        %v539 = vld [vmem:[%s4] sm:$0x3]
        %v541 = vlaneseq
        %v542 = vshrl.u32 %v541, 7
        %v543 = vsub.s32 0, %v542
        %v544 = vrot.slane %v539, %v543
        %v545 = vlaneseq
        %v546 = vshrl.u32 %v545, 7
        %v547 = vsub.s32 1, %v546
        %v548 = vrot.slane %v539, %v547
        %v567 = vunpack.c.l.b16 %v523
        %v568 = vunpack.c.h.b16 %v523
        %v569 = vunpack.c.l.b16 %v524
        %v570 = vunpack.c.h.b16 %v524
        %v571 = vunpack.c.l.b16 %v525
        %v572 = vunpack.c.h.b16 %v525
        %v573 = vunpack.c.l.b16 %v526
        %v574 = vunpack.c.h.b16 %v526
        %v575 = vunpack.c.l.b16 %v527
        %v576 = vunpack.c.h.b16 %v527
        %v577 = vunpack.c.l.b16 %v528
        %v578 = vunpack.c.h.b16 %v528
        %v579 = vunpack.c.l.b16 %v529
        %v580 = vunpack.c.h.b16 %v529
        %v581 = vunpack.c.l.b16 %v530
        %v582 = vunpack.c.h.b16 %v530
        %v583 = vunpack.c.l.b16 %v531
        %v584 = vunpack.c.h.b16 %v531
        %v585 = vunpack.c.l.b16 %v532
        %v586 = vunpack.c.h.b16 %v532
        %v587 = vunpack.c.l.b16 %v533
        %v588 = vunpack.c.h.b16 %v533
        %v589 = vunpack.c.l.b16 %v534
        %v590 = vunpack.c.h.b16 %v534
        %v591 = vunpack.c.l.b16 %v535
        %v592 = vunpack.c.h.b16 %v535
        %v593 = vunpack.c.l.b16 %v536
        %v594 = vunpack.c.h.b16 %v536
        %v595 = vunpack.c.l.b16 %v537
        %v596 = vunpack.c.h.b16 %v537
        %v597 = vunpack.c.l.b16 %v538
        %v598 = vunpack.c.h.b16 %v538
        %v599 = vpack.c.b16 %v569, %v567
        %v600 = vpack.c.b16 %v570, %v568
        %v601 = vpack.c.b16 %v573, %v571
        %v602 = vpack.c.b16 %v574, %v572
        %v603 = vpack.c.b16 %v577, %v575
        %v604 = vpack.c.b16 %v578, %v576
        %v605 = vpack.c.b16 %v581, %v579
        %v606 = vpack.c.b16 %v582, %v580
        %v607 = vpack.c.b16 %v585, %v583
        %v608 = vpack.c.b16 %v586, %v584
        %v609 = vpack.c.b16 %v589, %v587
        %v610 = vpack.c.b16 %v590, %v588
        %v611 = vpack.c.b16 %v593, %v591
        %v612 = vpack.c.b16 %v594, %v592
        %v613 = vpack.c.b16 %v597, %v595
        %v614 = vpack.c.b16 %v598, %v596
        %631 = vmatprep.subr.bf16.mxu0 %v614
        %632 = vmatpush1.bf16.msra.mxu0 %v613
        %633 = vmatprep.subr.bf16.mxu0 %v612
        %634 = vmatpush1.bf16.msra.mxu0 %v611
        %635 = vmatprep.subr.bf16.mxu0 %v610
        %636 = vmatpush1.bf16.msra.mxu0 %v609
        %637 = vmatprep.subr.bf16.mxu0 %v608
        %638 = vmatpush1.bf16.msra.mxu0 %v607
        %639 = vmatprep.subr.bf16.mxu0 %v606
        %640 = vmatpush1.bf16.msra.mxu0 %v605
        %641 = vmatprep.subr.bf16.mxu0 %v604
        %642 = vmatpush1.bf16.msra.mxu0 %v603
        %643 = vmatprep.subr.bf16.mxu0 %v602
        %644 = vmatpush1.bf16.msra.mxu0 %v601
        %645 = vmatprep.subr.bf16.mxu0 %v600
        %646 = vmatpush1.bf16.msra.mxu0 %v599
        %647 = vmatprep.subr.bf16.mxu0 0
        %648 = vmatpush2.bf16.msra.mxu0 0
        %649 = vmatprep.subr.bf16.mxu0 0
        %650 = vmatpush2.bf16.msra.mxu0 0
        %651 = vmatprep.subr.bf16.mxu0 0
        %652 = vmatpush2.bf16.msra.mxu0 0
        %653 = vmatprep.subr.bf16.mxu0 0
        %654 = vmatpush2.bf16.msra.mxu0 0
        %655 = vmatprep.subr.bf16.mxu0 0
        %656 = vmatpush2.bf16.msra.mxu0 0
        %657 = vmatprep.subr.bf16.mxu0 0
        %658 = vmatpush2.bf16.msra.mxu0 0
        %659 = vmatprep.subr.bf16.mxu0 0
        %660 = vmatpush2.bf16.msra.mxu0 0
        %661 = vmatprep.subr.bf16.mxu0 0
        %662 = vmatpush2.bf16.msra.mxu0 0
        %663 = vmatprep.mubr.bf16.mxu0 0
        %664 = vmatmul.mubr.bf16.gmra.mxu0 %v515
        %v665 = vpop.f32.mrf.mxu0
        %v666 = vadd.f32 %v544, %v665
        %v667 = vpop.f32.mrf.mxu0
        %v668 = vadd.f32 %v548, %v667
        %v669 = vpop.f32.mrf.mxu0
        %v670 = vadd.f32 %v544, %v669
        %v671 = vpop.f32.mrf.mxu0
        %v672 = vadd.f32 %v548, %v671
        %673 = vmatprep.mubr.bf16.mxu0 0
        %674 = vmatmul.mubr.bf16.gmra.mxu0 %v516
        %v675 = vpop.f32.mrf.mxu0
        %v676 = vadd.f32 %v544, %v675
        %v677 = vpop.f32.mrf.mxu0
        %v678 = vadd.f32 %v548, %v677
        %v679 = vpop.f32.mrf.mxu0
        %v680 = vadd.f32 %v544, %v679
        %v681 = vpop.f32.mrf.mxu0
        %v682 = vadd.f32 %v548, %v681
        %683 = vmatprep.mubr.bf16.mxu0 0
        %684 = vmatmul.mubr.bf16.gmra.mxu0 %v517
        %v685 = vpop.f32.mrf.mxu0
        %v686 = vadd.f32 %v544, %v685
        %v687 = vpop.f32.mrf.mxu0
        %v688 = vadd.f32 %v548, %v687
        %v689 = vpop.f32.mrf.mxu0
        %v690 = vadd.f32 %v544, %v689
        %v691 = vpop.f32.mrf.mxu0
        %v692 = vadd.f32 %v548, %v691
        %693 = vmatprep.mubr.bf16.mxu0 0
        %694 = vmatmul.mubr.bf16.gmra.mxu0 %v518
        %v695 = vpop.f32.mrf.mxu0
        %v696 = vadd.f32 %v544, %v695
        %v697 = vpop.f32.mrf.mxu0
        %v698 = vadd.f32 %v548, %v697
        %v699 = vpop.f32.mrf.mxu0
        %v700 = vadd.f32 %v544, %v699
        %v701 = vpop.f32.mrf.mxu0
        %v702 = vadd.f32 %v548, %v701
        %703 = vmatprep.mubr.bf16.mxu0 0
        %704 = vmatmul.mubr.bf16.gmra.mxu0 %v519
        %v705 = vpop.f32.mrf.mxu0
        %v706 = vadd.f32 %v544, %v705
        %v707 = vpop.f32.mrf.mxu0
        %v708 = vadd.f32 %v548, %v707
        %v709 = vpop.f32.mrf.mxu0
        %v710 = vadd.f32 %v544, %v709
        %v711 = vpop.f32.mrf.mxu0
        %v712 = vadd.f32 %v548, %v711
        %713 = vmatprep.mubr.bf16.mxu0 0
        %714 = vmatmul.mubr.bf16.gmra.mxu0 %v520
        %v715 = vpop.f32.mrf.mxu0
        %v716 = vadd.f32 %v544, %v715
        %v717 = vpop.f32.mrf.mxu0
        %v718 = vadd.f32 %v548, %v717
        %v719 = vpop.f32.mrf.mxu0
        %v720 = vadd.f32 %v544, %v719
        %v721 = vpop.f32.mrf.mxu0
        %v722 = vadd.f32 %v548, %v721
        %723 = vmatprep.mubr.bf16.mxu0 0
        %724 = vmatmul.mubr.bf16.gmra.mxu0 %v521
        %v725 = vpop.f32.mrf.mxu0
        %v726 = vadd.f32 %v544, %v725
        %v727 = vpop.f32.mrf.mxu0
        %v728 = vadd.f32 %v548, %v727
        %v729 = vpop.f32.mrf.mxu0
        %v730 = vadd.f32 %v544, %v729
        %v731 = vpop.f32.mrf.mxu0
        %v732 = vadd.f32 %v548, %v731
        %733 = vmatprep.mubr.bf16.mxu0 0
        %734 = vmatmul.mubr.bf16.gmra.mxu0 %v522
        %v735 = vpop.f32.mrf.mxu0
        %v736 = vadd.f32 %v544, %v735
        %v737 = vpop.f32.mrf.mxu0
        %v738 = vadd.f32 %v548, %v737
        %v739 = vpop.f32.mrf.mxu0
        %v740 = vadd.f32 %v544, %v739
        %v741 = vpop.f32.mrf.mxu0
        %v742 = vadd.f32 %v548, %v741
        %743 = vdwg.mxu0
        %v744 = vpack.c.bf16 %v670, %v666
        %v745 = vpack.c.bf16 %v672, %v668
        %v746 = vpack.c.bf16 %v680, %v676
        %v747 = vpack.c.bf16 %v682, %v678
        %v748 = vpack.c.bf16 %v690, %v686
        %v749 = vpack.c.bf16 %v692, %v688
        %v750 = vpack.c.bf16 %v700, %v696
        %v751 = vpack.c.bf16 %v702, %v698
        %v752 = vpack.c.bf16 %v710, %v706
        %v753 = vpack.c.bf16 %v712, %v708
        %v754 = vpack.c.bf16 %v720, %v716
        %v755 = vpack.c.bf16 %v722, %v718
        %v756 = vpack.c.bf16 %v730, %v726
        %v757 = vpack.c.bf16 %v732, %v728
        %v758 = vpack.c.bf16 %v740, %v736
        %v759 = vpack.c.bf16 %v742, %v738
        %v760 = vld [vmem:[%s5] sm:$0xf]
        %v761 = vld [vmem:[%s5 + $0x4] sm:$0xf]
        %v762 = vld [vmem:[%s5 + $0x8] sm:$0xf]
        %v763 = vld [vmem:[%s5 + $0xc] sm:$0xf]
        %v764 = vld [vmem:[%s5 + $0x10] sm:$0xf]
        %v765 = vld [vmem:[%s5 + $0x14] sm:$0xf]
        %v766 = vld [vmem:[%s5 + $0x18] sm:$0xf]
        %v767 = vld [vmem:[%s5 + $0x1c] sm:$0xf]
        %v768 = vld [vmem:[%s5 + $0x20] sm:$0xf]
        %v769 = vld [vmem:[%s5 + $0x24] sm:$0xf]
        %v770 = vld [vmem:[%s5 + $0x28] sm:$0xf]
        %v771 = vld [vmem:[%s5 + $0x2c] sm:$0xf]
        %v772 = vld [vmem:[%s5 + $0x30] sm:$0xf]
        %v773 = vld [vmem:[%s5 + $0x34] sm:$0xf]
        %v774 = vld [vmem:[%s5 + $0x38] sm:$0xf]
        %v775 = vld [vmem:[%s5 + $0x3c] sm:$0xf]
        %v776 = vld [vmem:[%s5 + $0x40] sm:$0xf]
        %v777 = vld [vmem:[%s5 + $0x44] sm:$0xf]
        %v778 = vld [vmem:[%s5 + $0x48] sm:$0xf]
        %v779 = vld [vmem:[%s5 + $0x4c] sm:$0xf]
        %v780 = vld [vmem:[%s5 + $0x50] sm:$0xf]
        %v781 = vld [vmem:[%s5 + $0x54] sm:$0xf]
        %v782 = vld [vmem:[%s5 + $0x58] sm:$0xf]
        %v783 = vld [vmem:[%s5 + $0x5c] sm:$0xf]
        %v784 = vld [vmem:[%s5 + $0x60] sm:$0xf]
        %v785 = vld [vmem:[%s5 + $0x64] sm:$0xf]
        %v786 = vld [vmem:[%s5 + $0x68] sm:$0xf]
        %v787 = vld [vmem:[%s5 + $0x6c] sm:$0xf]
        %v788 = vld [vmem:[%s5 + $0x70] sm:$0xf]
        %v789 = vld [vmem:[%s5 + $0x74] sm:$0xf]
        %v790 = vld [vmem:[%s5 + $0x78] sm:$0xf]
        %v791 = vld [vmem:[%s5 + $0x7c] sm:$0xf]
        %v792 = vld [vmem:[%s6] sm:$0x1]
        %v794 = vlaneseq
        %v795 = vshrl.u32 %v794, 7
        %v796 = vsub.s32 0, %v795
        %v797 = vrot.slane %v792, %v796
        %v831 = vunpack.c.l.b16 %v760
        %v832 = vunpack.c.l.b16 %v761
        %v833 = vunpack.c.l.b16 %v762
        %v834 = vunpack.c.l.b16 %v763
        %v835 = vunpack.c.l.b16 %v764
        %v836 = vunpack.c.l.b16 %v765
        %v837 = vunpack.c.l.b16 %v766
        %v838 = vunpack.c.l.b16 %v767
        %v839 = vunpack.c.l.b16 %v768
        %v840 = vunpack.c.l.b16 %v769
        %v841 = vunpack.c.l.b16 %v770
        %v842 = vunpack.c.l.b16 %v771
        %v843 = vunpack.c.l.b16 %v772
        %v844 = vunpack.c.l.b16 %v773
        %v845 = vunpack.c.l.b16 %v774
        %v846 = vunpack.c.l.b16 %v775
        %v847 = vunpack.c.l.b16 %v776
        %v848 = vunpack.c.l.b16 %v777
        %v849 = vunpack.c.l.b16 %v778
        %v850 = vunpack.c.l.b16 %v779
        %v851 = vunpack.c.l.b16 %v780
        %v852 = vunpack.c.l.b16 %v781
        %v853 = vunpack.c.l.b16 %v782
        %v854 = vunpack.c.l.b16 %v783
        %v855 = vunpack.c.l.b16 %v784
        %v856 = vunpack.c.l.b16 %v785
        %v857 = vunpack.c.l.b16 %v786
        %v858 = vunpack.c.l.b16 %v787
        %v859 = vunpack.c.l.b16 %v788
        %v860 = vunpack.c.l.b16 %v789
        %v861 = vunpack.c.l.b16 %v790
        %v862 = vunpack.c.l.b16 %v791
        %v863 = vpack.c.b16 %v832, %v831
        %v864 = vpack.c.b16 %v834, %v833
        %v865 = vpack.c.b16 %v836, %v835
        %v866 = vpack.c.b16 %v838, %v837
        %v867 = vpack.c.b16 %v840, %v839
        %v868 = vpack.c.b16 %v842, %v841
        %v869 = vpack.c.b16 %v844, %v843
        %v870 = vpack.c.b16 %v846, %v845
        %v871 = vpack.c.b16 %v848, %v847
        %v872 = vpack.c.b16 %v850, %v849
        %v873 = vpack.c.b16 %v852, %v851
        %v874 = vpack.c.b16 %v854, %v853
        %v875 = vpack.c.b16 %v856, %v855
        %v876 = vpack.c.b16 %v858, %v857
        %v877 = vpack.c.b16 %v860, %v859
        %v878 = vpack.c.b16 %v862, %v861
        %895 = vmatprep.subr.bf16.mxu0 0
        %896 = vmatpush1.bf16.msra.mxu0 %v870
        %897 = vmatprep.subr.bf16.mxu0 0
        %898 = vmatpush1.bf16.msra.mxu0 %v869
        %899 = vmatprep.subr.bf16.mxu0 0
        %900 = vmatpush1.bf16.msra.mxu0 %v868
        %901 = vmatprep.subr.bf16.mxu0 0
        %902 = vmatpush1.bf16.msra.mxu0 %v867
        %903 = vmatprep.subr.bf16.mxu0 0
        %904 = vmatpush1.bf16.msra.mxu0 %v866
        %905 = vmatprep.subr.bf16.mxu0 0
        %906 = vmatpush1.bf16.msra.mxu0 %v865
        %907 = vmatprep.subr.bf16.mxu0 0
        %908 = vmatpush1.bf16.msra.mxu0 %v864
        %909 = vmatprep.subr.bf16.mxu0 0
        %910 = vmatpush1.bf16.msra.mxu0 %v863
        %911 = vmatprep.subr.bf16.mxu0 0
        %912 = vmatpush2.bf16.msra.mxu0 %v878
        %913 = vmatprep.subr.bf16.mxu0 0
        %914 = vmatpush2.bf16.msra.mxu0 %v877
        %915 = vmatprep.subr.bf16.mxu0 0
        %916 = vmatpush2.bf16.msra.mxu0 %v876
        %917 = vmatprep.subr.bf16.mxu0 0
        %918 = vmatpush2.bf16.msra.mxu0 %v875
        %919 = vmatprep.subr.bf16.mxu0 0
        %920 = vmatpush2.bf16.msra.mxu0 %v874
        %921 = vmatprep.subr.bf16.mxu0 0
        %922 = vmatpush2.bf16.msra.mxu0 %v873
        %923 = vmatprep.subr.bf16.mxu0 0
        %924 = vmatpush2.bf16.msra.mxu0 %v872
        %925 = vmatprep.subr.bf16.mxu0 0
        %926 = vmatpush2.bf16.msra.mxu0 %v871
        %927 = vmatprep.mubr.bf16.mxu0 %v745
        %928 = vmatmul.mubr.bf16.gmra.mxu0 %v744
        %v929 = vpop.f32.mrf.mxu0
        %v930 = vadd.f32 %v797, %v929
        %v931 = vpop.f32.mrf.mxu0
        %v932 = vpop.f32.mrf.mxu0
        %v933 = vadd.f32 %v797, %v932
        %v934 = vpop.f32.mrf.mxu0
        %935 = vmatprep.mubr.bf16.mxu0 %v747
        %936 = vmatmul.mubr.bf16.gmra.mxu0 %v746
        %v937 = vpop.f32.mrf.mxu0
        %v938 = vadd.f32 %v797, %v937
        %v939 = vpop.f32.mrf.mxu0
        %v940 = vpop.f32.mrf.mxu0
        %v941 = vadd.f32 %v797, %v940
        %v942 = vpop.f32.mrf.mxu0
        %943 = vmatprep.mubr.bf16.mxu0 %v749
        %944 = vmatmul.mubr.bf16.gmra.mxu0 %v748
        %v945 = vpop.f32.mrf.mxu0
        %v946 = vadd.f32 %v797, %v945
        %v947 = vpop.f32.mrf.mxu0
        %v948 = vpop.f32.mrf.mxu0
        %v949 = vadd.f32 %v797, %v948
        %v950 = vpop.f32.mrf.mxu0
        %951 = vmatprep.mubr.bf16.mxu0 %v751
        %952 = vmatmul.mubr.bf16.gmra.mxu0 %v750
        %v953 = vpop.f32.mrf.mxu0
        %v954 = vadd.f32 %v797, %v953
        %v955 = vpop.f32.mrf.mxu0
        %v956 = vpop.f32.mrf.mxu0
        %v957 = vadd.f32 %v797, %v956
        %v958 = vpop.f32.mrf.mxu0
        %959 = vmatprep.mubr.bf16.mxu0 %v753
        %960 = vmatmul.mubr.bf16.gmra.mxu0 %v752
        %v961 = vpop.f32.mrf.mxu0
        %v962 = vadd.f32 %v797, %v961
        %v963 = vpop.f32.mrf.mxu0
        %v964 = vpop.f32.mrf.mxu0
        %v965 = vadd.f32 %v797, %v964
        %v966 = vpop.f32.mrf.mxu0
        %967 = vmatprep.mubr.bf16.mxu0 %v755
        %968 = vmatmul.mubr.bf16.gmra.mxu0 %v754
        %v969 = vpop.f32.mrf.mxu0
        %v970 = vadd.f32 %v797, %v969
        %v971 = vpop.f32.mrf.mxu0
        %v972 = vpop.f32.mrf.mxu0
        %v973 = vadd.f32 %v797, %v972
        %v974 = vpop.f32.mrf.mxu0
        %975 = vmatprep.mubr.bf16.mxu0 %v757
        %976 = vmatmul.mubr.bf16.gmra.mxu0 %v756
        %v977 = vpop.f32.mrf.mxu0
        %v978 = vadd.f32 %v797, %v977
        %v979 = vpop.f32.mrf.mxu0
        %v980 = vpop.f32.mrf.mxu0
        %v981 = vadd.f32 %v797, %v980
        %v982 = vpop.f32.mrf.mxu0
        %983 = vmatprep.mubr.bf16.mxu0 %v759
        %984 = vmatmul.mubr.bf16.gmra.mxu0 %v758
        %v985 = vpop.f32.mrf.mxu0
        %v986 = vadd.f32 %v797, %v985
        %v987 = vpop.f32.mrf.mxu0
        %v988 = vpop.f32.mrf.mxu0
        %v989 = vadd.f32 %v797, %v988
        %v990 = vpop.f32.mrf.mxu0
        %991 = vdwg.mxu0
        %v992 = vmax.f32 %v930, 0.0
        %v993 = vmax.f32 %v933, 0.0
        %v994 = vmax.f32 %v938, 0.0
        %v995 = vmax.f32 %v941, 0.0
        %v996 = vmax.f32 %v946, 0.0
        %v997 = vmax.f32 %v949, 0.0
        %v998 = vmax.f32 %v954, 0.0
        %v999 = vmax.f32 %v957, 0.0
        %v1000 = vmax.f32 %v962, 0.0
        %v1001 = vmax.f32 %v965, 0.0
        %v1002 = vmax.f32 %v970, 0.0
        %v1003 = vmax.f32 %v973, 0.0
        %v1004 = vmax.f32 %v978, 0.0
        %v1005 = vmax.f32 %v981, 0.0
        %v1006 = vmax.f32 %v986, 0.0
        %v1007 = vmax.f32 %v989, 0.0
        %1008 = vst [vmem:[%s272] sm:$0xff] %v992
        %1009 = vst [vmem:[%s272 + $0x8] sm:$0xff] %v993
        %1010 = vst [vmem:[%s272 + $0x10] sm:$0xff] %v994
        %1011 = vst [vmem:[%s272 + $0x18] sm:$0xff] %v995
        %1012 = vst [vmem:[%s272 + $0x20] sm:$0xff] %v996
        %1013 = vst [vmem:[%s272 + $0x28] sm:$0xff] %v997
        %1014 = vst [vmem:[%s272 + $0x30] sm:$0xff] %v998
        %1015 = vst [vmem:[%s272 + $0x38] sm:$0xff] %v999
        %1016 = vst [vmem:[%s272 + $0x40] sm:$0xff] %v1000
        %1017 = vst [vmem:[%s272 + $0x48] sm:$0xff] %v1001
        %1018 = vst [vmem:[%s272 + $0x50] sm:$0xff] %v1002
        %1019 = vst [vmem:[%s272 + $0x58] sm:$0xff] %v1003
        %1020 = vst [vmem:[%s272 + $0x60] sm:$0xff] %v1004
        %1021 = vst [vmem:[%s272 + $0x68] sm:$0xff] %v1005
        %1022 = vst [vmem:[%s272 + $0x70] sm:$0xff] %v1006
        %1023 = vst [vmem:[%s272 + $0x78] sm:$0xff] %v1007
        %s1024 = sand.u32 %s181, 1
        %s1025 = scalar_lea.sflag [#allocation3], %s1024
        %s1026 = sand.u32 %s181, 1
        %s1027 = smul.addr %s1026, 128
        %s1028 = scalar_lea.vmem [#allocation2], %s1027
        // Predicated region
        $region49: #{tpu_custom_call.1} parent=47 // pred_check
          %p1029 = pneg %p191
        $region50: #{tpu_custom_call.1} parent=47 // pred_check_branch
          %1031 = sbr.rel (%p1029) target = $region52
        $region51: #{tpu_custom_call.1} parent=47 // pred_region
          %s1032 = smul.u32 16, %s21
          %s1034 = ssub.s32 2048, 2048
          %1035 = vsyncadd %s1025, %s1034
          %s1036 = smul.addr %s1032, 128
          %s1037 = scalar_lea.hbm %s7, %s1036
          %s1038 = sshll.u32 %s1028, 4
          %s1039 = int_to_ptr.vmem [resolvable:$true] %s1038
          %1044 = dma.vmem_to_hbm [thread:$0]  %s1039, 2048, %s1037, %s1025, 128, 128, 8
        $region52: #{tpu_custom_call.1} parent=47 // pred_fallthru
          _
      $region48: #{tpu_custom_call.1} parent=5 // pred_fallthru
        _
      %p1045 = scmp.le.s32.totalorder 2, %s16
      // Predicated region
      $region53: #{tpu_custom_call.1} parent=5 // pred_check
        %p1046 = pneg %p1045
      $region54: #{tpu_custom_call.1} parent=5 // pred_check_branch
        %1048 = sbr.rel (%p1046) target = $region56
      $region55: #{tpu_custom_call.1} parent=5 // pred_region
        %s1049 = ssub.s32 %s16, 2
        // Predicated region
        $region57: #{tpu_custom_call.1} parent=55 // pred_check
          %p1050 = pneg %p197
        $region58: #{tpu_custom_call.1} parent=55 // pred_check_branch
          %1052 = sbr.rel (%p1050) target = $region60
        $region59: #{tpu_custom_call.1} parent=55 // pred_region
          %s1053 = sand.u32 %s182, 1
          %s1054 = scalar_lea.sflag [#allocation3], %s1053
          %s1055 = sand.u32 %s182, 1
          %s1056 = smul.addr %s1055, 128
          %s1057 = scalar_lea.vmem [#allocation2], %s1056
          %1058 = dma.done %s1054, 2048
        $region60: #{tpu_custom_call.1} parent=55 // pred_fallthru
          _
      $region56: #{tpu_custom_call.1} parent=5 // pred_fallthru
        _
    $region6: #{tpu_custom_call.1} parent=1 // loop_footer
      %s20 = sadd.s32 1, %s16
    $region7: #{tpu_custom_call.1} parent=1 // loop_footer_branch
      %15 = sbr.rel target = $region3
    $region8: #{tpu_custom_call.1} parent=1 // loop_exit
      _
    %1059 = vsyncpa [#allocation3], 1
    %s1060 = scalar_lea.sflag [#allocation3], 1
    %1061 = vsyncpa %s1060, 1

</llo_original>
